<compile_context>
chip_gen: v6e
topology: v6e:2x2x1
jax: 0.10.0
libtpu: 0.0.40
codegen_flags: <defaults>
</compile_context>

<pallas_src>
import jax
import jax.numpy as jnp
from jax.experimental import pallas as pl
from jax.experimental.pallas import tpu as pltpu


SUBLANE = 8  # pad batch to a full sublane group


def rnn_loop_kernel(xp_ref, whh_ref, h_ref):
    """Fully VMEM-resident, fully unrolled tanh-RNN recurrence.

    xp_ref : (S, B_pad, H)  pre-projected inputs  x_t @ W_ih^T + b_ih + b_hh
    whh_ref: (H, H)         W_hh^T
    h_ref  : (B_pad, H)     output = final hidden state (lane-dense)
    """
    whh = whh_ref[...]
    S = xp_ref.shape[0]
    # h_0 = 0  =>  h_1 = tanh(x_proj_0)
    h = jnp.tanh(xp_ref[0])
    # Static Python loop -> fully unrolled; S is small and compile-time known.
    for t in range(1, S):
        h = jnp.tanh(xp_ref[t] +
                     jnp.dot(h, whh, preferred_element_type=jnp.float32))
    h_ref[...] = h


def rnn_loop_forward(x_tokens, params):
    """x_tokens: int32 (B, S). Returns logits of shape (1, B, 1) like PyTorch."""
    emb_table = params["emb"]            # (num_tokens, E)
    w_ih = params["w_ih"]                # (H, E)
    w_hh = params["w_hh"]                # (H, H)
    b_ih = params["b_ih"]                # (H,)
    b_hh = params["b_hh"]                # (H,)
    w_out = params["w_out"]              # (1, H)
    b_out = params["b_out"]              # (1,)

    B, S = x_tokens.shape
    H, _E = w_ih.shape
    B_pad = max(SUBLANE, ((B + SUBLANE - 1) // SUBLANE) * SUBLANE)

    # --- Glue (outside the serial recurrence) ---------------------------------
    # Hoisted input projection: (num_tokens, H) table, biases folded in.
    proj_table = emb_table @ w_ih.T + (b_ih + b_hh)       # (num_tokens, H)
    x_proj = proj_table[x_tokens]                         # (B, S, H) gather
    x_proj = jnp.transpose(x_proj, (1, 0, 2))             # (S, B, H)
    x_proj = jnp.pad(x_proj, ((0, 0), (0, B_pad - B), (0, 0))).astype(jnp.float32)
    whh_t = w_hh.T.astype(jnp.float32)                    # (H, H)

    # --- Single-invocation kernel: whole problem resident in VMEM -------------
    h_last = pl.pallas_call(
        rnn_loop_kernel,
        out_shape=jax.ShapeDtypeStruct((B_pad, H), jnp.float32),
        grid=(1,),
        in_specs=[
            pl.BlockSpec((S, B_pad, H), lambda i: (0, 0, 0)),  # projected sequence
            pl.BlockSpec((H, H), lambda i: (0, 0)),            # W_hh^T
        ],
        out_specs=pl.BlockSpec((B_pad, H), lambda i: (0, 0)),  # final hidden state
        compiler_params=pltpu.CompilerParams(
            dimension_semantics=("arbitrary",)),
    )(x_proj, whh_t)

    # Final (H -> 1) head in the wrapper (trivial 2x32 @ 32x1; avoids lane-1 store).
    logit = h_last[:B] @ w_out.T + b_out                  # (B, 1)
    # PyTorch: hid_to_logit(h_last) with h_last (num_layers=1, B, H) -> (1, B, 1)
    return logit.reshape(1, B, 1)


def reference_forward(x_tokens, params):
    """Pure-JAX reference mirroring the PyTorch semantics."""
    emb = params["emb"][x_tokens]                         # (B, S, E)
    B, S, _E = emb.shape
    H = params["w_hh"].shape[0]
    h = jnp.zeros((B, H), jnp.float32)
    for t in range(S):
        h = jnp.tanh(emb[:, t, :] @ params["w_ih"].T + params["b_ih"]
                     + h @ params["w_hh"].T + params["b_hh"])
    logit = h @ params["w_out"].T + params["b_out"]       # (B, 1)
    return logit.reshape(1, B, 1)


def make_params(key, num_tokens, emb_size, hidden):
    ks = jax.random.split(key, 7)
    k_rnn = 1.0 / jnp.sqrt(hidden)
    k_lin = 1.0 / jnp.sqrt(hidden)
    return {
        "emb":   jax.random.normal(ks[0], (num_tokens, emb_size), jnp.float32),
        "w_ih":  jax.random.uniform(ks[1], (hidden, emb_size), jnp.float32, -k_rnn, k_rnn),
        "w_hh":  jax.random.uniform(ks[2], (hidden, hidden), jnp.float32, -k_rnn, k_rnn),
        "b_ih":  jax.random.uniform(ks[3], (hidden,), jnp.float32, -k_rnn, k_rnn),
        "b_hh":  jax.random.uniform(ks[4], (hidden,), jnp.float32, -k_rnn, k_rnn),
        "w_out": jax.random.uniform(ks[5], (1, hidden), jnp.float32, -k_lin, k_lin),
        "b_out": jax.random.uniform(ks[6], (1,), jnp.float32, -k_lin, k_lin),
    }


if __name__ == "__main__":
    NUM_TOKENS = 50
    EMB_SIZE = 256
    HIDDEN = 32
    BATCH = 2
    SEQ = 8

    key = jax.random.PRNGKey(0)
    k_params, k_x = jax.random.split(key)
    params = make_params(k_params, NUM_TOKENS, EMB_SIZE, HIDDEN)
    x = jax.random.randint(k_x, (BATCH, SEQ), 0, NUM_TOKENS, dtype=jnp.int32)

    out = rnn_loop_forward(x, params)
    out = jax.block_until_ready(out)

    ref = reference_forward(x, params)
    assert out.shape == (1, BATCH, 1)
    assert jnp.allclose(out, ref, atol=1e-4, rtol=1e-4)

    print("KERNEL_OK")
</pallas_src>

<mosaic_0001>
module attributes {stable_mosaic.version = 11 : i64} {
  func.func @rnn_loop_kernel(%arg0: i32, %arg1: memref<8x8x32xf32, #tpu.memory_space<vmem>>, %arg2: memref<32x32xf32, #tpu.memory_space<vmem>>, %arg3: memref<8x32xf32, #tpu.memory_space<vmem>>) attributes {dimension_semantics = [#tpu.dimension_semantics<arbitrary>], iteration_bounds = array<i64: 1>, scalar_prefetch = 0 : i64, scratch_operands = 0 : i64, tpu.core_type = #tpu.core_type<tc>, window_params = [{pipeline_mode = #tpu.pipeline_mode<synchronous>, transform_indices = @transform_0, window_bounds = array<i64: 8, 8, 32>}, {pipeline_mode = #tpu.pipeline_mode<synchronous>, transform_indices = @transform_1, window_bounds = array<i64: 32, 32>}, {pipeline_mode = #tpu.pipeline_mode<synchronous>, transform_indices = @transform_2, window_bounds = array<i64: 8, 32>}]} {
    %c0 = arith.constant 0 : index
    %c0_0 = arith.constant 0 : index
    %0 = vector.load %arg2[%c0, %c0_0] : memref<32x32xf32, #tpu.memory_space<vmem>>, vector<32x32xf32>
    %c0_1 = arith.constant 0 : index
    %c0_2 = arith.constant 0 : index
    %c0_3 = arith.constant 0 : index
    %1 = vector.load %arg1[%c0_1, %c0_2, %c0_3] : memref<8x8x32xf32, #tpu.memory_space<vmem>>, vector<1x8x32xf32>
    %2 = vector.shape_cast %1 : vector<1x8x32xf32> to vector<8x32xf32>
    %3 = math.tanh %2 : vector<8x32xf32>
    %c1 = arith.constant 1 : index
    %c0_4 = arith.constant 0 : index
    %c0_5 = arith.constant 0 : index
    %4 = vector.load %arg1[%c1, %c0_4, %c0_5] : memref<8x8x32xf32, #tpu.memory_space<vmem>>, vector<1x8x32xf32>
    %5 = vector.shape_cast %4 : vector<1x8x32xf32> to vector<8x32xf32>
    %cst = arith.constant dense<0.000000e+00> : vector<8x32xf32>
    %6 = tpu.matmul %3, %0, %cst {dimension_numbers = #tpu.dot_dimension_numbers<[1], [0], [0], [1], [0, 0, 1, 1], [], []>} : vector<8x32xf32>, vector<32x32xf32>, vector<8x32xf32> -> vector<8x32xf32>
    %7 = arith.addf %5, %6 : vector<8x32xf32>
    %8 = math.tanh %7 : vector<8x32xf32>
    %c2 = arith.constant 2 : index
    %c0_6 = arith.constant 0 : index
    %c0_7 = arith.constant 0 : index
    %9 = vector.load %arg1[%c2, %c0_6, %c0_7] : memref<8x8x32xf32, #tpu.memory_space<vmem>>, vector<1x8x32xf32>
    %10 = vector.shape_cast %9 : vector<1x8x32xf32> to vector<8x32xf32>
    %cst_8 = arith.constant dense<0.000000e+00> : vector<8x32xf32>
    %11 = tpu.matmul %8, %0, %cst_8 {dimension_numbers = #tpu.dot_dimension_numbers<[1], [0], [0], [1], [0, 0, 1, 1], [], []>} : vector<8x32xf32>, vector<32x32xf32>, vector<8x32xf32> -> vector<8x32xf32>
    %12 = arith.addf %10, %11 : vector<8x32xf32>
    %13 = math.tanh %12 : vector<8x32xf32>
    %c3 = arith.constant 3 : index
    %c0_9 = arith.constant 0 : index
    %c0_10 = arith.constant 0 : index
    %14 = vector.load %arg1[%c3, %c0_9, %c0_10] : memref<8x8x32xf32, #tpu.memory_space<vmem>>, vector<1x8x32xf32>
    %15 = vector.shape_cast %14 : vector<1x8x32xf32> to vector<8x32xf32>
    %cst_11 = arith.constant dense<0.000000e+00> : vector<8x32xf32>
    %16 = tpu.matmul %13, %0, %cst_11 {dimension_numbers = #tpu.dot_dimension_numbers<[1], [0], [0], [1], [0, 0, 1, 1], [], []>} : vector<8x32xf32>, vector<32x32xf32>, vector<8x32xf32> -> vector<8x32xf32>
    %17 = arith.addf %15, %16 : vector<8x32xf32>
    %18 = math.tanh %17 : vector<8x32xf32>
    %c4 = arith.constant 4 : index
    %c0_12 = arith.constant 0 : index
    %c0_13 = arith.constant 0 : index
    %19 = vector.load %arg1[%c4, %c0_12, %c0_13] : memref<8x8x32xf32, #tpu.memory_space<vmem>>, vector<1x8x32xf32>
    %20 = vector.shape_cast %19 : vector<1x8x32xf32> to vector<8x32xf32>
    %cst_14 = arith.constant dense<0.000000e+00> : vector<8x32xf32>
    %21 = tpu.matmul %18, %0, %cst_14 {dimension_numbers = #tpu.dot_dimension_numbers<[1], [0], [0], [1], [0, 0, 1, 1], [], []>} : vector<8x32xf32>, vector<32x32xf32>, vector<8x32xf32> -> vector<8x32xf32>
    %22 = arith.addf %20, %21 : vector<8x32xf32>
    %23 = math.tanh %22 : vector<8x32xf32>
    %c5 = arith.constant 5 : index
    %c0_15 = arith.constant 0 : index
    %c0_16 = arith.constant 0 : index
    %24 = vector.load %arg1[%c5, %c0_15, %c0_16] : memref<8x8x32xf32, #tpu.memory_space<vmem>>, vector<1x8x32xf32>
    %25 = vector.shape_cast %24 : vector<1x8x32xf32> to vector<8x32xf32>
    %cst_17 = arith.constant dense<0.000000e+00> : vector<8x32xf32>
    %26 = tpu.matmul %23, %0, %cst_17 {dimension_numbers = #tpu.dot_dimension_numbers<[1], [0], [0], [1], [0, 0, 1, 1], [], []>} : vector<8x32xf32>, vector<32x32xf32>, vector<8x32xf32> -> vector<8x32xf32>
    %27 = arith.addf %25, %26 : vector<8x32xf32>
    %28 = math.tanh %27 : vector<8x32xf32>
    %c6 = arith.constant 6 : index
    %c0_18 = arith.constant 0 : index
    %c0_19 = arith.constant 0 : index
    %29 = vector.load %arg1[%c6, %c0_18, %c0_19] : memref<8x8x32xf32, #tpu.memory_space<vmem>>, vector<1x8x32xf32>
    %30 = vector.shape_cast %29 : vector<1x8x32xf32> to vector<8x32xf32>
    %cst_20 = arith.constant dense<0.000000e+00> : vector<8x32xf32>
    %31 = tpu.matmul %28, %0, %cst_20 {dimension_numbers = #tpu.dot_dimension_numbers<[1], [0], [0], [1], [0, 0, 1, 1], [], []>} : vector<8x32xf32>, vector<32x32xf32>, vector<8x32xf32> -> vector<8x32xf32>
    %32 = arith.addf %30, %31 : vector<8x32xf32>
    %33 = math.tanh %32 : vector<8x32xf32>
    %c7 = arith.constant 7 : index
    %c0_21 = arith.constant 0 : index
    %c0_22 = arith.constant 0 : index
    %34 = vector.load %arg1[%c7, %c0_21, %c0_22] : memref<8x8x32xf32, #tpu.memory_space<vmem>>, vector<1x8x32xf32>
    %35 = vector.shape_cast %34 : vector<1x8x32xf32> to vector<8x32xf32>
    %cst_23 = arith.constant dense<0.000000e+00> : vector<8x32xf32>
    %36 = tpu.matmul %33, %0, %cst_23 {dimension_numbers = #tpu.dot_dimension_numbers<[1], [0], [0], [1], [0, 0, 1, 1], [], []>} : vector<8x32xf32>, vector<32x32xf32>, vector<8x32xf32> -> vector<8x32xf32>
    %37 = arith.addf %35, %36 : vector<8x32xf32>
    %38 = math.tanh %37 : vector<8x32xf32>
    %c0_24 = arith.constant 0 : index
    %c0_25 = arith.constant 0 : index
    %39 = vector.load %arg3[%c0_24, %c0_25] : memref<8x32xf32, #tpu.memory_space<vmem>>, vector<8x32xf32>
    tpu.vector_store %arg3[%c0_24, %c0_25], %38 {strides = array<i32>} : memref<8x32xf32, #tpu.memory_space<vmem>>, vector<8x32xf32>,
    return
  }
  func.func @transform_0(%arg0: i32) -> (i32, i32, i32) {
    %c0_i32 = arith.constant 0 : i32
    %c0_i32_0 = arith.constant 0 : i32
    %c0_i32_1 = arith.constant 0 : i32
    %c0_i32_2 = arith.constant 0 : i32
    return %c0_i32, %c0_i32_0, %c0_i32_1 : i32, i32, i32
  }
  func.func @transform_1(%arg0: i32) -> (i32, i32) {
    %c0_i32 = arith.constant 0 : i32
    %c0_i32_0 = arith.constant 0 : i32
    %c0_i32_1 = arith.constant 0 : i32
    return %c0_i32, %c0_i32_0 : i32, i32
  }
  func.func @transform_2(%arg0: i32) -> (i32, i32) {
    %c0_i32 = arith.constant 0 : i32
    %c0_i32_0 = arith.constant 0 : i32
    %c0_i32_1 = arith.constant 0 : i32
    return %c0_i32, %c0_i32_0 : i32, i32
  }
}

</mosaic_0001>

<llo_original>
// kernel: tpu_custom_call.1
$region0: #{tpu_custom_call.1}
  #allocation0 [shape = 'u32[]', space=smem, size = 0x4, offset = 0x4, fixed_abs, tag = 'smem constant byte address 0x4 - core index']
  #allocation1 [shape = 'u32[144,128]{1,0:T(1,128)}', space=vmem, size = 0x12000, scoped, tag = 'internal scratch']
  %s0 = inlined_call_operand.hbm [shape: f32[8,8,32], index: 0, kind: input, shape index: {}]
  %s1 = inlined_call_operand.hbm [shape: f32[32,32], index: 1, kind: input, shape index: {}]
  %s2 = inlined_call_operand.hbm [shape: f32[8,32], index: 2, kind: output, shape index: {}]
  %s3 = sld [smem:[#allocation0]]
  $region26: #{tpu_custom_call.1} parent=0
    _
  %s5 = ssub.s32 1, %s3
  %s6 = scalar_select 0, %s5, %s3
  $region1: #{tpu_custom_call.1} parent=0
    #allocation2 [shape = 'u8[32768]{0}', space=vmem, size = 0x8000, scoped, tag = 'input window, operand 0, single buffered']
    #allocation3 [shape = 's32[1]{0}', space=sflag, size = 0x4, scoped, tag = 'scoped memory for tpu_custom_call.1']
    #allocation4 [shape = 's32[1]{0}', space=sflag, size = 0x4, scoped, tag = 'scoped memory for tpu_custom_call.1']
    #allocation5 [shape = 'u8[16384]{0}', space=vmem, size = 0x4000, scoped, tag = 'input window, operand 1, single buffered']
    #allocation6 [shape = 's32[1]{0}', space=sflag, size = 0x4, scoped, tag = 'scoped memory for tpu_custom_call.1']
    #allocation7 [shape = 'u8[4096]{0}', space=vmem, size = 0x1000, scoped, tag = 'output window, operand 0, single buffered']
    %7 = vsyncpa [#allocation3], 0
    %8 = vsyncpa [#allocation6], 0
    %9 = vsyncpa [#allocation4], 0
    // Predicated region
    $region2: #{tpu_custom_call.1} parent=1 // pred_check
      _
    $region3: #{tpu_custom_call.1} parent=1 // pred_check_branch
      %11 = sbr.rel (0) target = $region5
    $region4: #{tpu_custom_call.1} parent=1 // pred_region
      %s13 = ssub.s32 1024, 1024
      %14 = vsyncadd [#allocation3], %s13
      %s15 = sshll.u32 [#allocation2], 4
      %s16 = int_to_ptr.vmem [resolvable:$true] %s15
      %21 = dma.hbm_to_vmem [thread:$0]  %s0, 1024, %s16, [#allocation3], 128, 128, 8
    $region5: #{tpu_custom_call.1} parent=1 // pred_fallthru
      _
    // Predicated region
    $region6: #{tpu_custom_call.1} parent=1 // pred_check
      _
    $region7: #{tpu_custom_call.1} parent=1 // pred_check_branch
      %23 = sbr.rel (0) target = $region9
    $region8: #{tpu_custom_call.1} parent=1 // pred_region
      %s25 = ssub.s32 512, 512
      %26 = vsyncadd [#allocation6], %s25
      %s27 = sshll.u32 [#allocation5], 4
      %s28 = int_to_ptr.vmem [resolvable:$true] %s27
      %33 = dma.hbm_to_vmem [thread:$0]  %s1, 512, %s28, [#allocation6], 128, 128, 8
    $region9: #{tpu_custom_call.1} parent=1 // pred_fallthru
      _
    // Predicated region
    $region10: #{tpu_custom_call.1} parent=1 // pred_check
      _
    $region11: #{tpu_custom_call.1} parent=1 // pred_check_branch
      %35 = sbr.rel (0) target = $region13
    $region12: #{tpu_custom_call.1} parent=1 // pred_region
      %36 = dma.done [#allocation3], 1024
    $region13: #{tpu_custom_call.1} parent=1 // pred_fallthru
      _
    // Predicated region
    $region14: #{tpu_custom_call.1} parent=1 // pred_check
      _
    $region15: #{tpu_custom_call.1} parent=1 // pred_check_branch
      %38 = sbr.rel (0) target = $region17
    $region16: #{tpu_custom_call.1} parent=1 // pred_region
      %39 = dma.done [#allocation6], 512
    $region17: #{tpu_custom_call.1} parent=1 // pred_fallthru
      _
    %v40 = vld [vmem:[#allocation5] sm:$0xff]
    %v41 = vld [vmem:[#allocation5 + $0x8] sm:$0xff]
    %v42 = vld [vmem:[#allocation5 + $0x10] sm:$0xff]
    %v43 = vld [vmem:[#allocation5 + $0x18] sm:$0xff]
    %v44 = vld [vmem:[#allocation2] sm:$0xff]
    %v45 = vtanh.pop %v44
    %s46 = scalar_lea.vmem [#allocation2], 8
    %v47 = vld [vmem:[%s46] sm:$0xff]
    %vm48 = vcmask 261120
    %v50 = vsel %vm48, %v45, 0
    %52 = vmatprep.subr.mxu0 0.0
    %53 = vmatpush1.msra.mxu0 0.0
    %54 = vmatprep.subr.mxu0 0.0
    %55 = vmatpush1.msra.mxu0 0.0
    %56 = vmatprep.subr.mxu0 0.0
    %57 = vmatpush1.msra.mxu0 0.0
    %58 = vmatprep.subr.mxu0 0.0
    %59 = vmatpush1.msra.mxu0 0.0
    %60 = vmatprep.subr.mxu0 0.0
    %61 = vmatpush1.msra.mxu0 0.0
    %62 = vmatprep.subr.mxu0 0.0
    %63 = vmatpush1.msra.mxu0 0.0
    %64 = vmatprep.subr.mxu0 0.0
    %65 = vmatpush1.msra.mxu0 0.0
    %66 = vmatprep.subr.mxu0 0.0
    %67 = vmatpush1.msra.mxu0 0.0
    %68 = vmatprep.subr.mxu0 0.0
    %69 = vmatpush1.msra.mxu0 0.0
    %70 = vmatprep.subr.mxu0 0.0
    %71 = vmatpush1.msra.mxu0 0.0
    %72 = vmatprep.subr.mxu0 0.0
    %73 = vmatpush1.msra.mxu0 0.0
    %74 = vmatprep.subr.mxu0 0.0
    %75 = vmatpush1.msra.mxu0 0.0
    %76 = vmatprep.subr.mxu0 0.0
    %77 = vmatpush1.msra.mxu0 %v43
    %78 = vmatprep.subr.mxu0 0.0
    %79 = vmatpush1.msra.mxu0 %v42
    %80 = vmatprep.subr.mxu0 0.0
    %81 = vmatpush1.msra.mxu0 %v41
    %82 = vmatprep.subr.mxu0 0.0
    %83 = vmatpush1.msra.mxu0 %v40
    %84 = vmatprep.subr.mxu0 0.0
    %85 = vmatpush2.msra.mxu0 0.0
    %86 = vmatprep.subr.mxu0 0.0
    %87 = vmatpush2.msra.mxu0 0.0
    %88 = vmatprep.subr.mxu0 0.0
    %89 = vmatpush2.msra.mxu0 0.0
    %90 = vmatprep.subr.mxu0 0.0
    %91 = vmatpush2.msra.mxu0 0.0
    %92 = vmatprep.subr.mxu0 0.0
    %93 = vmatpush2.msra.mxu0 0.0
    %94 = vmatprep.subr.mxu0 0.0
    %95 = vmatpush2.msra.mxu0 0.0
    %96 = vmatprep.subr.mxu0 0.0
    %97 = vmatpush2.msra.mxu0 0.0
    %98 = vmatprep.subr.mxu0 0.0
    %99 = vmatpush2.msra.mxu0 0.0
    %100 = vmatprep.subr.mxu0 0.0
    %101 = vmatpush2.msra.mxu0 0.0
    %102 = vmatprep.subr.mxu0 0.0
    %103 = vmatpush2.msra.mxu0 0.0
    %104 = vmatprep.subr.mxu0 0.0
    %105 = vmatpush2.msra.mxu0 0.0
    %106 = vmatprep.subr.mxu0 0.0
    %107 = vmatpush2.msra.mxu0 0.0
    %108 = vmatprep.subr.mxu0 0.0
    %109 = vmatpush2.msra.mxu0 0.0
    %110 = vmatprep.subr.mxu0 0.0
    %111 = vmatpush2.msra.mxu0 0.0
    %112 = vmatprep.subr.mxu0 0.0
    %113 = vmatpush2.msra.mxu0 0.0
    %114 = vmatprep.subr.mxu0 0.0
    %115 = vmatpush2.msra.mxu0 0.0
    %116 = vmatprep.mubr.f32.mxu0 0.0
    %117 = vmatmul.mubr.f32.gmra.mxu0 %v50
    %v118 = vpop.f32.mrf.mxu0
    %v119 = vadd.f32 0.0, %v118
    %v120 = vpop.f32.mrf.mxu0
    %121 = vdwg.mxu0
    %v122 = vadd.f32 %v47, %v119
    %v123 = vtanh.pop %v122
    %s124 = scalar_lea.vmem [#allocation2], 16
    %v125 = vld [vmem:[%s124] sm:$0xff]
    %v127 = vsel %vm48, %v123, 0
    %129 = vmatprep.subr.mxu0 0.0
    %130 = vmatpush1.msra.mxu0 0.0
    %131 = vmatprep.subr.mxu0 0.0
    %132 = vmatpush1.msra.mxu0 0.0
    %133 = vmatprep.subr.mxu0 0.0
    %134 = vmatpush1.msra.mxu0 0.0
    %135 = vmatprep.subr.mxu0 0.0
    %136 = vmatpush1.msra.mxu0 0.0
    %137 = vmatprep.subr.mxu0 0.0
    %138 = vmatpush1.msra.mxu0 0.0
    %139 = vmatprep.subr.mxu0 0.0
    %140 = vmatpush1.msra.mxu0 0.0
    %141 = vmatprep.subr.mxu0 0.0
    %142 = vmatpush1.msra.mxu0 0.0
    %143 = vmatprep.subr.mxu0 0.0
    %144 = vmatpush1.msra.mxu0 0.0
    %145 = vmatprep.subr.mxu0 0.0
    %146 = vmatpush1.msra.mxu0 0.0
    %147 = vmatprep.subr.mxu0 0.0
    %148 = vmatpush1.msra.mxu0 0.0
    %149 = vmatprep.subr.mxu0 0.0
    %150 = vmatpush1.msra.mxu0 0.0
    %151 = vmatprep.subr.mxu0 0.0
    %152 = vmatpush1.msra.mxu0 0.0
    %153 = vmatprep.subr.mxu0 0.0
    %154 = vmatpush1.msra.mxu0 %v43
    %155 = vmatprep.subr.mxu0 0.0
    %156 = vmatpush1.msra.mxu0 %v42
    %157 = vmatprep.subr.mxu0 0.0
    %158 = vmatpush1.msra.mxu0 %v41
    %159 = vmatprep.subr.mxu0 0.0
    %160 = vmatpush1.msra.mxu0 %v40
    %161 = vmatprep.subr.mxu0 0.0
    %162 = vmatpush2.msra.mxu0 0.0
    %163 = vmatprep.subr.mxu0 0.0
    %164 = vmatpush2.msra.mxu0 0.0
    %165 = vmatprep.subr.mxu0 0.0
    %166 = vmatpush2.msra.mxu0 0.0
    %167 = vmatprep.subr.mxu0 0.0
    %168 = vmatpush2.msra.mxu0 0.0
    %169 = vmatprep.subr.mxu0 0.0
    %170 = vmatpush2.msra.mxu0 0.0
    %171 = vmatprep.subr.mxu0 0.0
    %172 = vmatpush2.msra.mxu0 0.0
    %173 = vmatprep.subr.mxu0 0.0
    %174 = vmatpush2.msra.mxu0 0.0
    %175 = vmatprep.subr.mxu0 0.0
    %176 = vmatpush2.msra.mxu0 0.0
    %177 = vmatprep.subr.mxu0 0.0
    %178 = vmatpush2.msra.mxu0 0.0
    %179 = vmatprep.subr.mxu0 0.0
    %180 = vmatpush2.msra.mxu0 0.0
    %181 = vmatprep.subr.mxu0 0.0
    %182 = vmatpush2.msra.mxu0 0.0
    %183 = vmatprep.subr.mxu0 0.0
    %184 = vmatpush2.msra.mxu0 0.0
    %185 = vmatprep.subr.mxu0 0.0
    %186 = vmatpush2.msra.mxu0 0.0
    %187 = vmatprep.subr.mxu0 0.0
    %188 = vmatpush2.msra.mxu0 0.0
    %189 = vmatprep.subr.mxu0 0.0
    %190 = vmatpush2.msra.mxu0 0.0
    %191 = vmatprep.subr.mxu0 0.0
    %192 = vmatpush2.msra.mxu0 0.0
    %193 = vmatprep.mubr.f32.mxu0 0.0
    %194 = vmatmul.mubr.f32.gmra.mxu0 %v127
    %v195 = vpop.f32.mrf.mxu0
    %v196 = vadd.f32 0.0, %v195
    %v197 = vpop.f32.mrf.mxu0
    %198 = vdwg.mxu0
    %v199 = vadd.f32 %v125, %v196
    %v200 = vtanh.pop %v199
    %s201 = scalar_lea.vmem [#allocation2], 24
    %v202 = vld [vmem:[%s201] sm:$0xff]
    %v204 = vsel %vm48, %v200, 0
    %206 = vmatprep.subr.mxu0 0.0
    %207 = vmatpush1.msra.mxu0 0.0
    %208 = vmatprep.subr.mxu0 0.0
    %209 = vmatpush1.msra.mxu0 0.0
    %210 = vmatprep.subr.mxu0 0.0
    %211 = vmatpush1.msra.mxu0 0.0
    %212 = vmatprep.subr.mxu0 0.0
    %213 = vmatpush1.msra.mxu0 0.0
    %214 = vmatprep.subr.mxu0 0.0
    %215 = vmatpush1.msra.mxu0 0.0
    %216 = vmatprep.subr.mxu0 0.0
    %217 = vmatpush1.msra.mxu0 0.0
    %218 = vmatprep.subr.mxu0 0.0
    %219 = vmatpush1.msra.mxu0 0.0
    %220 = vmatprep.subr.mxu0 0.0
    %221 = vmatpush1.msra.mxu0 0.0
    %222 = vmatprep.subr.mxu0 0.0
    %223 = vmatpush1.msra.mxu0 0.0
    %224 = vmatprep.subr.mxu0 0.0
    %225 = vmatpush1.msra.mxu0 0.0
    %226 = vmatprep.subr.mxu0 0.0
    %227 = vmatpush1.msra.mxu0 0.0
    %228 = vmatprep.subr.mxu0 0.0
    %229 = vmatpush1.msra.mxu0 0.0
    %230 = vmatprep.subr.mxu0 0.0
    %231 = vmatpush1.msra.mxu0 %v43
    %232 = vmatprep.subr.mxu0 0.0
    %233 = vmatpush1.msra.mxu0 %v42
    %234 = vmatprep.subr.mxu0 0.0
    %235 = vmatpush1.msra.mxu0 %v41
    %236 = vmatprep.subr.mxu0 0.0
    %237 = vmatpush1.msra.mxu0 %v40
    %238 = vmatprep.subr.mxu0 0.0
    %239 = vmatpush2.msra.mxu0 0.0
    %240 = vmatprep.subr.mxu0 0.0
    %241 = vmatpush2.msra.mxu0 0.0
    %242 = vmatprep.subr.mxu0 0.0
    %243 = vmatpush2.msra.mxu0 0.0
    %244 = vmatprep.subr.mxu0 0.0
    %245 = vmatpush2.msra.mxu0 0.0
    %246 = vmatprep.subr.mxu0 0.0
    %247 = vmatpush2.msra.mxu0 0.0
    %248 = vmatprep.subr.mxu0 0.0
    %249 = vmatpush2.msra.mxu0 0.0
    %250 = vmatprep.subr.mxu0 0.0
    %251 = vmatpush2.msra.mxu0 0.0
    %252 = vmatprep.subr.mxu0 0.0
    %253 = vmatpush2.msra.mxu0 0.0
    %254 = vmatprep.subr.mxu0 0.0
    %255 = vmatpush2.msra.mxu0 0.0
    %256 = vmatprep.subr.mxu0 0.0
    %257 = vmatpush2.msra.mxu0 0.0
    %258 = vmatprep.subr.mxu0 0.0
    %259 = vmatpush2.msra.mxu0 0.0
    %260 = vmatprep.subr.mxu0 0.0
    %261 = vmatpush2.msra.mxu0 0.0
    %262 = vmatprep.subr.mxu0 0.0
    %263 = vmatpush2.msra.mxu0 0.0
    %264 = vmatprep.subr.mxu0 0.0
    %265 = vmatpush2.msra.mxu0 0.0
    %266 = vmatprep.subr.mxu0 0.0
    %267 = vmatpush2.msra.mxu0 0.0
    %268 = vmatprep.subr.mxu0 0.0
    %269 = vmatpush2.msra.mxu0 0.0
    %270 = vmatprep.mubr.f32.mxu0 0.0
    %271 = vmatmul.mubr.f32.gmra.mxu0 %v204
    %v272 = vpop.f32.mrf.mxu0
    %v273 = vadd.f32 0.0, %v272
    %v274 = vpop.f32.mrf.mxu0
    %275 = vdwg.mxu0
    %v276 = vadd.f32 %v202, %v273
    %v277 = vtanh.pop %v276
    %s278 = scalar_lea.vmem [#allocation2], 32
    %v279 = vld [vmem:[%s278] sm:$0xff]
    %v281 = vsel %vm48, %v277, 0
    %283 = vmatprep.subr.mxu0 0.0
    %284 = vmatpush1.msra.mxu0 0.0
    %285 = vmatprep.subr.mxu0 0.0
    %286 = vmatpush1.msra.mxu0 0.0
    %287 = vmatprep.subr.mxu0 0.0
    %288 = vmatpush1.msra.mxu0 0.0
    %289 = vmatprep.subr.mxu0 0.0
    %290 = vmatpush1.msra.mxu0 0.0
    %291 = vmatprep.subr.mxu0 0.0
    %292 = vmatpush1.msra.mxu0 0.0
    %293 = vmatprep.subr.mxu0 0.0
    %294 = vmatpush1.msra.mxu0 0.0
    %295 = vmatprep.subr.mxu0 0.0
    %296 = vmatpush1.msra.mxu0 0.0
    %297 = vmatprep.subr.mxu0 0.0
    %298 = vmatpush1.msra.mxu0 0.0
    %299 = vmatprep.subr.mxu0 0.0
    %300 = vmatpush1.msra.mxu0 0.0
    %301 = vmatprep.subr.mxu0 0.0
    %302 = vmatpush1.msra.mxu0 0.0
    %303 = vmatprep.subr.mxu0 0.0
    %304 = vmatpush1.msra.mxu0 0.0
    %305 = vmatprep.subr.mxu0 0.0
    %306 = vmatpush1.msra.mxu0 0.0
    %307 = vmatprep.subr.mxu0 0.0
    %308 = vmatpush1.msra.mxu0 %v43
    %309 = vmatprep.subr.mxu0 0.0
    %310 = vmatpush1.msra.mxu0 %v42
    %311 = vmatprep.subr.mxu0 0.0
    %312 = vmatpush1.msra.mxu0 %v41
    %313 = vmatprep.subr.mxu0 0.0
    %314 = vmatpush1.msra.mxu0 %v40
    %315 = vmatprep.subr.mxu0 0.0
    %316 = vmatpush2.msra.mxu0 0.0
    %317 = vmatprep.subr.mxu0 0.0
    %318 = vmatpush2.msra.mxu0 0.0
    %319 = vmatprep.subr.mxu0 0.0
    %320 = vmatpush2.msra.mxu0 0.0
    %321 = vmatprep.subr.mxu0 0.0
    %322 = vmatpush2.msra.mxu0 0.0
    %323 = vmatprep.subr.mxu0 0.0
    %324 = vmatpush2.msra.mxu0 0.0
    %325 = vmatprep.subr.mxu0 0.0
    %326 = vmatpush2.msra.mxu0 0.0
    %327 = vmatprep.subr.mxu0 0.0
    %328 = vmatpush2.msra.mxu0 0.0
    %329 = vmatprep.subr.mxu0 0.0
    %330 = vmatpush2.msra.mxu0 0.0
    %331 = vmatprep.subr.mxu0 0.0
    %332 = vmatpush2.msra.mxu0 0.0
    %333 = vmatprep.subr.mxu0 0.0
    %334 = vmatpush2.msra.mxu0 0.0
    %335 = vmatprep.subr.mxu0 0.0
    %336 = vmatpush2.msra.mxu0 0.0
    %337 = vmatprep.subr.mxu0 0.0
    %338 = vmatpush2.msra.mxu0 0.0
    %339 = vmatprep.subr.mxu0 0.0
    %340 = vmatpush2.msra.mxu0 0.0
    %341 = vmatprep.subr.mxu0 0.0
    %342 = vmatpush2.msra.mxu0 0.0
    %343 = vmatprep.subr.mxu0 0.0
    %344 = vmatpush2.msra.mxu0 0.0
    %345 = vmatprep.subr.mxu0 0.0
    %346 = vmatpush2.msra.mxu0 0.0
    %347 = vmatprep.mubr.f32.mxu0 0.0
    %348 = vmatmul.mubr.f32.gmra.mxu0 %v281
    %v349 = vpop.f32.mrf.mxu0
    %v350 = vadd.f32 0.0, %v349
    %v351 = vpop.f32.mrf.mxu0
    %352 = vdwg.mxu0
    %v353 = vadd.f32 %v279, %v350
    %v354 = vtanh.pop %v353
    %s355 = scalar_lea.vmem [#allocation2], 40
    %v356 = vld [vmem:[%s355] sm:$0xff]
    %v358 = vsel %vm48, %v354, 0
    %360 = vmatprep.subr.mxu0 0.0
    %361 = vmatpush1.msra.mxu0 0.0
    %362 = vmatprep.subr.mxu0 0.0
    %363 = vmatpush1.msra.mxu0 0.0
    %364 = vmatprep.subr.mxu0 0.0
    %365 = vmatpush1.msra.mxu0 0.0
    %366 = vmatprep.subr.mxu0 0.0
    %367 = vmatpush1.msra.mxu0 0.0
    %368 = vmatprep.subr.mxu0 0.0
    %369 = vmatpush1.msra.mxu0 0.0
    %370 = vmatprep.subr.mxu0 0.0
    %371 = vmatpush1.msra.mxu0 0.0
    %372 = vmatprep.subr.mxu0 0.0
    %373 = vmatpush1.msra.mxu0 0.0
    %374 = vmatprep.subr.mxu0 0.0
    %375 = vmatpush1.msra.mxu0 0.0
    %376 = vmatprep.subr.mxu0 0.0
    %377 = vmatpush1.msra.mxu0 0.0
    %378 = vmatprep.subr.mxu0 0.0
    %379 = vmatpush1.msra.mxu0 0.0
    %380 = vmatprep.subr.mxu0 0.0
    %381 = vmatpush1.msra.mxu0 0.0
    %382 = vmatprep.subr.mxu0 0.0
    %383 = vmatpush1.msra.mxu0 0.0
    %384 = vmatprep.subr.mxu0 0.0
    %385 = vmatpush1.msra.mxu0 %v43
    %386 = vmatprep.subr.mxu0 0.0
    %387 = vmatpush1.msra.mxu0 %v42
    %388 = vmatprep.subr.mxu0 0.0
    %389 = vmatpush1.msra.mxu0 %v41
    %390 = vmatprep.subr.mxu0 0.0
    %391 = vmatpush1.msra.mxu0 %v40
    %392 = vmatprep.subr.mxu0 0.0
    %393 = vmatpush2.msra.mxu0 0.0
    %394 = vmatprep.subr.mxu0 0.0
    %395 = vmatpush2.msra.mxu0 0.0
    %396 = vmatprep.subr.mxu0 0.0
    %397 = vmatpush2.msra.mxu0 0.0
    %398 = vmatprep.subr.mxu0 0.0
    %399 = vmatpush2.msra.mxu0 0.0
    %400 = vmatprep.subr.mxu0 0.0
    %401 = vmatpush2.msra.mxu0 0.0
    %402 = vmatprep.subr.mxu0 0.0
    %403 = vmatpush2.msra.mxu0 0.0
    %404 = vmatprep.subr.mxu0 0.0
    %405 = vmatpush2.msra.mxu0 0.0
    %406 = vmatprep.subr.mxu0 0.0
    %407 = vmatpush2.msra.mxu0 0.0
    %408 = vmatprep.subr.mxu0 0.0
    %409 = vmatpush2.msra.mxu0 0.0
    %410 = vmatprep.subr.mxu0 0.0
    %411 = vmatpush2.msra.mxu0 0.0
    %412 = vmatprep.subr.mxu0 0.0
    %413 = vmatpush2.msra.mxu0 0.0
    %414 = vmatprep.subr.mxu0 0.0
    %415 = vmatpush2.msra.mxu0 0.0
    %416 = vmatprep.subr.mxu0 0.0
    %417 = vmatpush2.msra.mxu0 0.0
    %418 = vmatprep.subr.mxu0 0.0
    %419 = vmatpush2.msra.mxu0 0.0
    %420 = vmatprep.subr.mxu0 0.0
    %421 = vmatpush2.msra.mxu0 0.0
    %422 = vmatprep.subr.mxu0 0.0
    %423 = vmatpush2.msra.mxu0 0.0
    %424 = vmatprep.mubr.f32.mxu0 0.0
    %425 = vmatmul.mubr.f32.gmra.mxu0 %v358
    %v426 = vpop.f32.mrf.mxu0
    %v427 = vadd.f32 0.0, %v426
    %v428 = vpop.f32.mrf.mxu0
    %429 = vdwg.mxu0
    %v430 = vadd.f32 %v356, %v427
    %v431 = vtanh.pop %v430
    %s432 = scalar_lea.vmem [#allocation2], 48
    %v433 = vld [vmem:[%s432] sm:$0xff]
    %v435 = vsel %vm48, %v431, 0
    %437 = vmatprep.subr.mxu0 0.0
    %438 = vmatpush1.msra.mxu0 0.0
    %439 = vmatprep.subr.mxu0 0.0
    %440 = vmatpush1.msra.mxu0 0.0
    %441 = vmatprep.subr.mxu0 0.0
    %442 = vmatpush1.msra.mxu0 0.0
    %443 = vmatprep.subr.mxu0 0.0
    %444 = vmatpush1.msra.mxu0 0.0
    %445 = vmatprep.subr.mxu0 0.0
    %446 = vmatpush1.msra.mxu0 0.0
    %447 = vmatprep.subr.mxu0 0.0
    %448 = vmatpush1.msra.mxu0 0.0
    %449 = vmatprep.subr.mxu0 0.0
    %450 = vmatpush1.msra.mxu0 0.0
    %451 = vmatprep.subr.mxu0 0.0
    %452 = vmatpush1.msra.mxu0 0.0
    %453 = vmatprep.subr.mxu0 0.0
    %454 = vmatpush1.msra.mxu0 0.0
    %455 = vmatprep.subr.mxu0 0.0
    %456 = vmatpush1.msra.mxu0 0.0
    %457 = vmatprep.subr.mxu0 0.0
    %458 = vmatpush1.msra.mxu0 0.0
    %459 = vmatprep.subr.mxu0 0.0
    %460 = vmatpush1.msra.mxu0 0.0
    %461 = vmatprep.subr.mxu0 0.0
    %462 = vmatpush1.msra.mxu0 %v43
    %463 = vmatprep.subr.mxu0 0.0
    %464 = vmatpush1.msra.mxu0 %v42
    %465 = vmatprep.subr.mxu0 0.0
    %466 = vmatpush1.msra.mxu0 %v41
    %467 = vmatprep.subr.mxu0 0.0
    %468 = vmatpush1.msra.mxu0 %v40
    %469 = vmatprep.subr.mxu0 0.0
    %470 = vmatpush2.msra.mxu0 0.0
    %471 = vmatprep.subr.mxu0 0.0
    %472 = vmatpush2.msra.mxu0 0.0
    %473 = vmatprep.subr.mxu0 0.0
    %474 = vmatpush2.msra.mxu0 0.0
    %475 = vmatprep.subr.mxu0 0.0
    %476 = vmatpush2.msra.mxu0 0.0
    %477 = vmatprep.subr.mxu0 0.0
    %478 = vmatpush2.msra.mxu0 0.0
    %479 = vmatprep.subr.mxu0 0.0
    %480 = vmatpush2.msra.mxu0 0.0
    %481 = vmatprep.subr.mxu0 0.0
    %482 = vmatpush2.msra.mxu0 0.0
    %483 = vmatprep.subr.mxu0 0.0
    %484 = vmatpush2.msra.mxu0 0.0
    %485 = vmatprep.subr.mxu0 0.0
    %486 = vmatpush2.msra.mxu0 0.0
    %487 = vmatprep.subr.mxu0 0.0
    %488 = vmatpush2.msra.mxu0 0.0
    %489 = vmatprep.subr.mxu0 0.0
    %490 = vmatpush2.msra.mxu0 0.0
    %491 = vmatprep.subr.mxu0 0.0
    %492 = vmatpush2.msra.mxu0 0.0
    %493 = vmatprep.subr.mxu0 0.0
    %494 = vmatpush2.msra.mxu0 0.0
    %495 = vmatprep.subr.mxu0 0.0
    %496 = vmatpush2.msra.mxu0 0.0
    %497 = vmatprep.subr.mxu0 0.0
    %498 = vmatpush2.msra.mxu0 0.0
    %499 = vmatprep.subr.mxu0 0.0
    %500 = vmatpush2.msra.mxu0 0.0
    %501 = vmatprep.mubr.f32.mxu0 0.0
    %502 = vmatmul.mubr.f32.gmra.mxu0 %v435
    %v503 = vpop.f32.mrf.mxu0
    %v504 = vadd.f32 0.0, %v503
    %v505 = vpop.f32.mrf.mxu0
    %506 = vdwg.mxu0
    %v507 = vadd.f32 %v433, %v504
    %v508 = vtanh.pop %v507
    %s509 = scalar_lea.vmem [#allocation2], 56
    %v510 = vld [vmem:[%s509] sm:$0xff]
    %v512 = vsel %vm48, %v508, 0
    %514 = vmatprep.subr.mxu0 0.0
    %515 = vmatpush1.msra.mxu0 0.0
    %516 = vmatprep.subr.mxu0 0.0
    %517 = vmatpush1.msra.mxu0 0.0
    %518 = vmatprep.subr.mxu0 0.0
    %519 = vmatpush1.msra.mxu0 0.0
    %520 = vmatprep.subr.mxu0 0.0
    %521 = vmatpush1.msra.mxu0 0.0
    %522 = vmatprep.subr.mxu0 0.0
    %523 = vmatpush1.msra.mxu0 0.0
    %524 = vmatprep.subr.mxu0 0.0
    %525 = vmatpush1.msra.mxu0 0.0
    %526 = vmatprep.subr.mxu0 0.0
    %527 = vmatpush1.msra.mxu0 0.0
    %528 = vmatprep.subr.mxu0 0.0
    %529 = vmatpush1.msra.mxu0 0.0
    %530 = vmatprep.subr.mxu0 0.0
    %531 = vmatpush1.msra.mxu0 0.0
    %532 = vmatprep.subr.mxu0 0.0
    %533 = vmatpush1.msra.mxu0 0.0
    %534 = vmatprep.subr.mxu0 0.0
    %535 = vmatpush1.msra.mxu0 0.0
    %536 = vmatprep.subr.mxu0 0.0
    %537 = vmatpush1.msra.mxu0 0.0
    %538 = vmatprep.subr.mxu0 0.0
    %539 = vmatpush1.msra.mxu0 %v43
    %540 = vmatprep.subr.mxu0 0.0
    %541 = vmatpush1.msra.mxu0 %v42
    %542 = vmatprep.subr.mxu0 0.0
    %543 = vmatpush1.msra.mxu0 %v41
    %544 = vmatprep.subr.mxu0 0.0
    %545 = vmatpush1.msra.mxu0 %v40
    %546 = vmatprep.subr.mxu0 0.0
    %547 = vmatpush2.msra.mxu0 0.0
    %548 = vmatprep.subr.mxu0 0.0
    %549 = vmatpush2.msra.mxu0 0.0
    %550 = vmatprep.subr.mxu0 0.0
    %551 = vmatpush2.msra.mxu0 0.0
    %552 = vmatprep.subr.mxu0 0.0
    %553 = vmatpush2.msra.mxu0 0.0
    %554 = vmatprep.subr.mxu0 0.0
    %555 = vmatpush2.msra.mxu0 0.0
    %556 = vmatprep.subr.mxu0 0.0
    %557 = vmatpush2.msra.mxu0 0.0
    %558 = vmatprep.subr.mxu0 0.0
    %559 = vmatpush2.msra.mxu0 0.0
    %560 = vmatprep.subr.mxu0 0.0
    %561 = vmatpush2.msra.mxu0 0.0
    %562 = vmatprep.subr.mxu0 0.0
    %563 = vmatpush2.msra.mxu0 0.0
    %564 = vmatprep.subr.mxu0 0.0
    %565 = vmatpush2.msra.mxu0 0.0
    %566 = vmatprep.subr.mxu0 0.0
    %567 = vmatpush2.msra.mxu0 0.0
    %568 = vmatprep.subr.mxu0 0.0
    %569 = vmatpush2.msra.mxu0 0.0
    %570 = vmatprep.subr.mxu0 0.0
    %571 = vmatpush2.msra.mxu0 0.0
    %572 = vmatprep.subr.mxu0 0.0
    %573 = vmatpush2.msra.mxu0 0.0
    %574 = vmatprep.subr.mxu0 0.0
    %575 = vmatpush2.msra.mxu0 0.0
    %576 = vmatprep.subr.mxu0 0.0
    %577 = vmatpush2.msra.mxu0 0.0
    %578 = vmatprep.mubr.f32.mxu0 0.0
    %579 = vmatmul.mubr.f32.gmra.mxu0 %v512
    %v580 = vpop.f32.mrf.mxu0
    %v581 = vadd.f32 0.0, %v580
    %v582 = vpop.f32.mrf.mxu0
    %583 = vdwg.mxu0
    %v584 = vadd.f32 %v510, %v581
    %v585 = vtanh.pop %v584
    %586 = vst.msk [vmem:[#allocation7] sm:$0xff] %vm48, %v585
    // Predicated region
    $region18: #{tpu_custom_call.1} parent=1 // pred_check
      _
    $region19: #{tpu_custom_call.1} parent=1 // pred_check_branch
      %588 = sbr.rel (0) target = $region21
    $region20: #{tpu_custom_call.1} parent=1 // pred_region
      %s590 = ssub.s32 128, 128
      %591 = vsyncadd [#allocation4], %s590
      %s593 = sshll.u32 [#allocation7], 4
      %s594 = int_to_ptr.vmem [resolvable:$true] %s593
      %596 = dma.vmem_to_hbm [thread:$0]  %s594, 128, %s2, [#allocation4]
    $region21: #{tpu_custom_call.1} parent=1 // pred_fallthru
      _
    // Predicated region
    $region22: #{tpu_custom_call.1} parent=1 // pred_check
      _
    $region23: #{tpu_custom_call.1} parent=1 // pred_check_branch
      %598 = sbr.rel (0) target = $region25
    $region24: #{tpu_custom_call.1} parent=1 // pred_region
      %599 = dma.done [#allocation4], 128
    $region25: #{tpu_custom_call.1} parent=1 // pred_fallthru
      _
    %600 = vsyncpa [#allocation3], 1
    %601 = vsyncpa [#allocation6], 1
    %602 = vsyncpa [#allocation4], 1

</llo_original>
